<compile_context>
chip_gen: v6e
topology: v6e:2x2x1
jax: 0.10.0
libtpu: 0.0.40
codegen_flags: <defaults>
</compile_context>

<pallas_src>
import numpy as np
import jax
import jax.numpy as jnp
from jax.experimental import pallas as pl
from jax.experimental.pallas import tpu as pltpu


def _round_up(n, m):
    return ((n + m - 1) // m) * m


# ----------------------------------------------------------------------------
# Kernels
# ----------------------------------------------------------------------------
def _decoder_kernel(z_ref, w1_ref, b1_ref, w2_ref, b2_ref, o_ref, h_ref):
    """One (TILE_B, TILE_N) output tile of: relu(z@W1+b1) @ W2 + b2.

    h_ref: (TILE_B, H) bf16 VMEM scratch; the hidden layer is computed once
    per B-tile (at j==0) and reused across all D-tiles.  W2/b2/out stream
    per D-tile; z/W1/b1 are small and loaded once.
    """
    @pl.when(pl.program_id(1) == 0)
    def _():
        h = jnp.dot(z_ref[...].astype(jnp.bfloat16), w1_ref[...],
                    preferred_element_type=jnp.float32)
        h = jnp.maximum(h + b1_ref[...], 0.0)
        h_ref[...] = h.astype(jnp.bfloat16)

    o = jnp.dot(h_ref[...], w2_ref[...],
                preferred_element_type=jnp.float32) + b2_ref[...]
    o_ref[...] = o.astype(o_ref.dtype)


def _sse_kernel(x_ref, z_ref, w1_ref, b1_ref, w2_ref, b2_ref, o_ref,
                h_ref, acc_ref):
    """Fused decode + sum-of-squared-errors, accumulated over D tiles.

    h_ref   : VMEM (TILE_B, H) bf16 hidden activations; computed at j==0.
    acc_ref : VMEM (TILE_B, 1) f32 running SSE; zeroed at j==0.
    o_ref   : lane-dense (TILE_B, 128) slab, written only at the last D tile
              (value broadcast across lanes; wrapper slices lane 0).
    """
    j = pl.program_id(1)

    @pl.when(j == 0)
    def _():
        h = jnp.dot(z_ref[...].astype(jnp.bfloat16), w1_ref[...],
                    preferred_element_type=jnp.float32)
        h = jnp.maximum(h + b1_ref[...], 0.0)
        h_ref[...] = h.astype(jnp.bfloat16)
        acc_ref[...] = jnp.zeros_like(acc_ref)

    dec = jnp.dot(h_ref[...], w2_ref[...],
                  preferred_element_type=jnp.float32) + b2_ref[...]

    diff = x_ref[...] - dec                                   # f32
    acc_ref[...] += jnp.sum(diff * diff, axis=1, keepdims=True)

    @pl.when(j == pl.num_programs(1) - 1)
    def _():
        o_ref[...] = jnp.broadcast_to(acc_ref[...], o_ref.shape).astype(o_ref.dtype)


# ----------------------------------------------------------------------------
# Wrapper module
# ----------------------------------------------------------------------------
class IsotropicGaussianPallas:
    """JAX/Pallas port of IsotropicGaussian with a 2-layer MLP decoder as `net`."""

    # TODO(synk): `net` is fixed to a 2-layer MLP decoder here; the PyTorch
    # module accepts an arbitrary nn.Module.

    def __init__(self, latent_dim, hidden_dim, out_chw, sigma=1.0, seed=0,
                 tile_b=8, tile_n=512):
        self.latent_dim = latent_dim
        self.hidden_dim = hidden_dim
        self.out_chw = out_chw                     # (C, H, W)
        self.D = int(np.prod(out_chw))
        self.sigma = jnp.float32(sigma)

        # Tiling: tile_b multiple of 8 (f32 sublanes); tile_n multiple of 128,
        # clamped so tiny decoders do not over-pad.  Larger lane tiles give
        # fewer grid steps (amortize ~0.35us/step) and unmasked vst stores.
        self.tile_b = int(tile_b)
        self.tile_n = min(int(tile_n), _round_up(self.D, 128))

        # Pad D to a multiple of the lane tile so every W2/b2/x/out block is
        # (.., 128k); padded columns are zero -> no effect on decode or SSE.
        self.D_pad = _round_up(self.D, self.tile_n)

        # Deterministic parameter init (synthetic weights).  Weights in bf16
        # (MXU-native, halves HBM bytes of the dominant W2 stream); biases f32.
        k = jax.random.PRNGKey(seed)
        k1, k2 = jax.random.split(k)
        w1 = (jax.random.normal(k1, (latent_dim, hidden_dim), jnp.float32)
              * (1.0 / np.sqrt(latent_dim)))
        w2 = (jax.random.normal(k2, (hidden_dim, self.D), jnp.float32)
              * (1.0 / np.sqrt(hidden_dim)))
        if self.D_pad != self.D:
            w2 = jnp.pad(w2, ((0, 0), (0, self.D_pad - self.D)))
        self.w1 = w1.astype(jnp.bfloat16)
        self.w2 = w2.astype(jnp.bfloat16)
        self.b1 = jnp.zeros((1, hidden_dim), jnp.float32)
        self.b2 = jnp.zeros((1, self.D_pad), jnp.float32)

        # D axis is "arbitrary" in both kernels: the hidden-layer scratch (and
        # the SSE accumulator) must see j==0..last sequentially per B-tile.
        self._compiler_params = pltpu.CompilerParams(
            dimension_semantics=("parallel", "arbitrary"),
            vmem_limit_bytes=32 * 1024 * 1024,
        )

    # ---- helpers -------------------------------------------------------------
    def _pad_batch(self, a, B):
        Bp = _round_up(B, self.tile_b)
        if Bp != B:
            a = jnp.pad(a, ((0, Bp - B), (0, 0)))
        return a, Bp

    # ---- forward: net(z) -----------------------------------------------------
    def forward(self, z):
        B = z.shape[0]
        z = z.astype(jnp.float32)
        z_p, Bp = self._pad_batch(z, B)
        tb, tn = self.tile_b, self.tile_n
        Z, H = self.latent_dim, self.hidden_dim
        grid = (Bp // tb, self.D_pad // tn)

        out_flat = pl.pallas_call(
            _decoder_kernel,
            out_shape=jax.ShapeDtypeStruct((Bp, self.D_pad), jnp.float32),
            grid_spec=pltpu.PrefetchScalarGridSpec(
                num_scalar_prefetch=0,
                grid=grid,
                in_specs=[
                    pl.BlockSpec((tb, Z), lambda i, j: (i, 0)),     # z
                    pl.BlockSpec((Z, H), lambda i, j: (0, 0)),      # W1
                    pl.BlockSpec((1, H), lambda i, j: (0, 0)),      # b1
                    pl.BlockSpec((H, tn), lambda i, j: (0, j)),     # W2 (streamed)
                    pl.BlockSpec((1, tn), lambda i, j: (0, j)),     # b2
                ],
                out_specs=pl.BlockSpec((tb, tn), lambda i, j: (i, j)),
                scratch_shapes=[pltpu.VMEM((tb, H), jnp.bfloat16)],  # hidden h
            ),
            compiler_params=self._compiler_params,
        )(z_p, self.w1, self.b1, self.w2, self.b2)

        out_flat = out_flat[:B, :self.D]
        C, Hh, Ww = self.out_chw
        return out_flat.reshape(B, C, Hh, Ww)      # NCHW, matches PyTorch

    __call__ = forward

    # ---- log_likelihood(x, z) ------------------------------------------------
    def log_likelihood(self, x, z):
        B = z.shape[0]
        z = z.astype(jnp.float32)
        x_flat = x.reshape(B, -1).astype(jnp.float32)   # row-major == torch .view
        z_p, Bp = self._pad_batch(z, B)
        x_p, _ = self._pad_batch(x_flat, B)
        if self.D_pad != self.D:
            x_p = jnp.pad(x_p, ((0, 0), (0, self.D_pad - self.D)))

        tb, tn = self.tile_b, self.tile_n
        Z, H = self.latent_dim, self.hidden_dim
        grid = (Bp // tb, self.D_pad // tn)

        sse = pl.pallas_call(
            _sse_kernel,
            out_shape=jax.ShapeDtypeStruct((Bp, 128), jnp.float32),
            grid_spec=pltpu.PrefetchScalarGridSpec(
                num_scalar_prefetch=0,
                grid=grid,
                in_specs=[
                    pl.BlockSpec((tb, tn), lambda i, j: (i, j)),    # x (streamed)
                    pl.BlockSpec((tb, Z), lambda i, j: (i, 0)),     # z
                    pl.BlockSpec((Z, H), lambda i, j: (0, 0)),      # W1
                    pl.BlockSpec((1, H), lambda i, j: (0, 0)),      # b1
                    pl.BlockSpec((H, tn), lambda i, j: (0, j)),     # W2 (streamed)
                    pl.BlockSpec((1, tn), lambda i, j: (0, j)),     # b2
                ],
                # lane-dense accumulator-resident output (same block across j)
                out_specs=pl.BlockSpec((tb, 128), lambda i, j: (i, 0)),
                scratch_shapes=[pltpu.VMEM((tb, H), jnp.bfloat16),   # hidden h
                                pltpu.VMEM((tb, 1), jnp.float32)],   # SSE acc
            ),
            compiler_params=self._compiler_params,
        )(x_p, z_p, self.w1, self.b1, self.w2, self.b2)

        sse = sse[:B, 0]                            # (B,)
        # O(B) scalar epilogue in plain JAX (keeps log/divide out of the kernel).
        D = jnp.float32(self.D)
        sig = self.sigma
        const = -D * 0.5 * jnp.log(jnp.float32(2.0 * np.pi)) - D * jnp.log(sig)
        return const - 0.5 * sse / (sig * sig)

    # ---- sample(z) -----------------------------------------------------------
    def sample(self, z, key):
        x_hat = self.forward(z)
        noise = jax.random.normal(key, x_hat.shape, x_hat.dtype)
        return x_hat + noise * self.sigma


# ----------------------------------------------------------------------------
# Reference (plain JAX, same bf16 weight / f32-accumulate numerics)
# ----------------------------------------------------------------------------
def _ref_decode_flat(m, z):
    zb = z.astype(jnp.bfloat16)
    h = jnp.dot(zb, m.w1, preferred_element_type=jnp.float32) + m.b1
    h = jnp.maximum(h, 0.0)
    out = jnp.dot(h.astype(jnp.bfloat16), m.w2,
                  preferred_element_type=jnp.float32) + m.b2
    return out[:, :m.D]


def _ref_forward(m, z):
    out = _ref_decode_flat(m, z)
    C, H, W = m.out_chw
    return out.reshape(z.shape[0], C, H, W)


def _ref_loglik(m, x, z):
    dec = _ref_decode_flat(m, z)
    xf = x.reshape(x.shape[0], -1).astype(jnp.float32)
    D = jnp.float32(m.D)
    sig = m.sigma
    const = -D * 0.5 * jnp.log(jnp.float32(2.0 * np.pi)) - D * jnp.log(sig)
    return const - 0.5 * jnp.sum((xf - dec) ** 2, axis=1) / (sig * sig)


if __name__ == "__main__":
    B, Z, Hdim = 2, 16, 32
    C, Himg, Wimg = 4, 16, 16                       # D = 1024 -> 2 D-tiles of 512

    key = jax.random.PRNGKey(0)
    kz, kx = jax.random.split(key)
    z = jax.random.normal(kz, (B, Z), jnp.float32)
    x = jax.random.normal(kx, (B, C, Himg, Wimg), jnp.float32)

    model = IsotropicGaussianPallas(Z, Hdim, (C, Himg, Wimg), sigma=1.5, seed=0)

    out = model(z)
    ll = model.log_likelihood(x, z)
    jax.block_until_ready((out, ll))

    ref_out = _ref_forward(model, z)
    ref_ll = _ref_loglik(model, x, z)
    np.testing.assert_allclose(np.asarray(out), np.asarray(ref_out),
                               rtol=1e-3, atol=1e-3)
    np.testing.assert_allclose(np.asarray(ll), np.asarray(ref_ll),
                               rtol=1e-3, atol=1e-1)

    print("KERNEL_OK")
</pallas_src>

<mosaic_0001>
module attributes {stable_mosaic.version = 11 : i64} {
  func.func @_decoder_kernel(%arg0: i32, %arg1: i32, %arg2: memref<8x16xf32, #tpu.memory_space<vmem>>, %arg3: memref<16x32xbf16, #tpu.memory_space<vmem>>, %arg4: memref<1x32xf32, #tpu.memory_space<vmem>>, %arg5: memref<32x512xbf16, #tpu.memory_space<vmem>>, %arg6: memref<1x512xf32, #tpu.memory_space<vmem>>, %arg7: memref<8x512xf32, #tpu.memory_space<vmem>>, %arg8: memref<8x32xbf16, #tpu.memory_space<vmem>>) attributes {dimension_semantics = [#tpu.dimension_semantics<parallel>, #tpu.dimension_semantics<arbitrary>], iteration_bounds = array<i64: 1, 2>, scalar_prefetch = 0 : i64, scratch_operands = 1 : i64, tpu.core_type = #tpu.core_type<tc>, window_params = [{transform_indices = @transform_0, window_bounds = array<i64: 8, 16>}, {pipeline_mode = #tpu.pipeline_mode<synchronous>, transform_indices = @transform_1, window_bounds = array<i64: 16, 32>}, {pipeline_mode = #tpu.pipeline_mode<synchronous>, transform_indices = @transform_2, window_bounds = array<i64: 1, 32>}, {transform_indices = @transform_3, window_bounds = array<i64: 32, 512>}, {transform_indices = @transform_4, window_bounds = array<i64: 1, 512>}, {transform_indices = @transform_5, window_bounds = array<i64: 8, 512>}]} {
    %c0_i32 = arith.constant 0 : i32
    %0 = arith.cmpi eq, %arg1, %c0_i32 : i32
    %1 = arith.extui %0 : i1 to i32
    %c0_i32_0 = arith.constant 0 : i32
    %2 = arith.cmpi ne, %1, %c0_i32_0 : i32
    scf.if %2 {
      %c0_8 = arith.constant 0 : index
      %c0_9 = arith.constant 0 : index
      %10 = vector.load %arg2[%c0_8, %c0_9] : memref<8x16xf32, #tpu.memory_space<vmem>>, vector<8x16xf32>
      %11 = arith.truncf %10 : vector<8x16xf32> to vector<8x16xbf16>
      %c0_10 = arith.constant 0 : index
      %c0_11 = arith.constant 0 : index
      %12 = vector.load %arg3[%c0_10, %c0_11] : memref<16x32xbf16, #tpu.memory_space<vmem>>, vector<16x32xbf16>
      %cst_12 = arith.constant dense<0.000000e+00> : vector<8x32xf32>
      %13 = tpu.matmul %11, %12, %cst_12 {dimension_numbers = #tpu.dot_dimension_numbers<[1], [0], [0], [1], [0, 0, 1, 1], [], []>} : vector<8x16xbf16>, vector<16x32xbf16>, vector<8x32xf32> -> vector<8x32xf32>
      %c0_13 = arith.constant 0 : index
      %c0_14 = arith.constant 0 : index
      %14 = vector.load %arg4[%c0_13, %c0_14] : memref<1x32xf32, #tpu.memory_space<vmem>>, vector<1x32xf32>
      %15 = vector.broadcast %14 : vector<1x32xf32> to vector<8x32xf32>
      %16 = arith.addf %13, %15 : vector<8x32xf32>
      %cst_15 = arith.constant 0.000000e+00 : f32
      %17 = vector.broadcast %cst_15 : f32 to vector<8x32xf32>
      %18 = arith.maximumf %16, %17 : vector<8x32xf32>
      %19 = arith.truncf %18 : vector<8x32xf32> to vector<8x32xbf16>
      %c0_16 = arith.constant 0 : index
      %c0_17 = arith.constant 0 : index
      %20 = vector.load %arg8[%c0_16, %c0_17] : memref<8x32xbf16, #tpu.memory_space<vmem>>, vector<8x32xbf16>
      tpu.vector_store %arg8[%c0_16, %c0_17], %19 {strides = array<i32>} : memref<8x32xbf16, #tpu.memory_space<vmem>>, vector<8x32xbf16>,
    } else {
    }
    %c0 = arith.constant 0 : index
    %c0_1 = arith.constant 0 : index
    %3 = vector.load %arg8[%c0, %c0_1] : memref<8x32xbf16, #tpu.memory_space<vmem>>, vector<8x32xbf16>
    %c0_2 = arith.constant 0 : index
    %c0_3 = arith.constant 0 : index
    %4 = vector.load %arg5[%c0_2, %c0_3] : memref<32x512xbf16, #tpu.memory_space<vmem>>, vector<32x512xbf16>
    %cst = arith.constant dense<0.000000e+00> : vector<8x512xf32>
    %5 = tpu.matmul %3, %4, %cst {dimension_numbers = #tpu.dot_dimension_numbers<[1], [0], [0], [1], [0, 0, 1, 1], [], []>} : vector<8x32xbf16>, vector<32x512xbf16>, vector<8x512xf32> -> vector<8x512xf32>
    %c0_4 = arith.constant 0 : index
    %c0_5 = arith.constant 0 : index
    %6 = vector.load %arg6[%c0_4, %c0_5] : memref<1x512xf32, #tpu.memory_space<vmem>>, vector<1x512xf32>
    %7 = vector.broadcast %6 : vector<1x512xf32> to vector<8x512xf32>
    %8 = arith.addf %5, %7 : vector<8x512xf32>
    %c0_6 = arith.constant 0 : index
    %c0_7 = arith.constant 0 : index
    %9 = vector.load %arg7[%c0_6, %c0_7] : memref<8x512xf32, #tpu.memory_space<vmem>>, vector<8x512xf32>
    tpu.vector_store %arg7[%c0_6, %c0_7], %8 {strides = array<i32>} : memref<8x512xf32, #tpu.memory_space<vmem>>, vector<8x512xf32>,
    return
  }
  func.func @transform_0(%arg0: i32, %arg1: i32) -> (i32, i32) {
    %c0_i32 = arith.constant 0 : i32
    %c0_i32_0 = arith.constant 0 : i32
    return %arg0, %c0_i32 : i32, i32
  }
  func.func @transform_1(%arg0: i32, %arg1: i32) -> (i32, i32) {
    %c0_i32 = arith.constant 0 : i32
    %c0_i32_0 = arith.constant 0 : i32
    %c0_i32_1 = arith.constant 0 : i32
    return %c0_i32, %c0_i32_0 : i32, i32
  }
  func.func @transform_2(%arg0: i32, %arg1: i32) -> (i32, i32) {
    %c0_i32 = arith.constant 0 : i32
    %c0_i32_0 = arith.constant 0 : i32
    %c0_i32_1 = arith.constant 0 : i32
    return %c0_i32, %c0_i32_0 : i32, i32
  }
  func.func @transform_3(%arg0: i32, %arg1: i32) -> (i32, i32) {
    %c0_i32 = arith.constant 0 : i32
    %c0_i32_0 = arith.constant 0 : i32
    return %c0_i32, %arg1 : i32, i32
  }
  func.func @transform_4(%arg0: i32, %arg1: i32) -> (i32, i32) {
    %c0_i32 = arith.constant 0 : i32
    %c0_i32_0 = arith.constant 0 : i32
    return %c0_i32, %arg1 : i32, i32
  }
  func.func @transform_5(%arg0: i32, %arg1: i32) -> (i32, i32) {
    %c0_i32 = arith.constant 0 : i32
    return %arg0, %arg1 : i32, i32
  }
}

</mosaic_0001>

<llo_original>
// kernel: tpu_custom_call.1
$region0: #{tpu_custom_call.1}
  #allocation0 [shape = 'u32[]', space=smem, size = 0x4, offset = 0x4, fixed_abs, tag = 'smem constant byte address 0x4 - core index']
  #allocation1 [shape = 'u32[144,128]{1,0:T(1,128)}', space=vmem, size = 0x12000, scoped, tag = 'internal scratch']
  #allocation2 [shape = 'bf16[8,32]{1,0:T(8,128)(2,1)}', space=vmem, size = 0x800, scoped, tag = 'scratch operand']
  %s0 = inlined_call_operand.hbm [shape: f32[8,16], index: 0, kind: input, shape index: {}]
  %s1 = inlined_call_operand.hbm [shape: bf16[16,32], index: 1, kind: input, shape index: {}]
  %s2 = inlined_call_operand.vmem [shape: f32[1,32], index: 2, kind: input, shape index: {}]
  %s3 = inlined_call_operand.hbm [shape: bf16[32,1024], index: 3, kind: input, shape index: {}]
  %s4 = inlined_call_operand.hbm [shape: f32[1,1024], index: 4, kind: input, shape index: {}]
  %s5 = inlined_call_operand.hbm [shape: f32[8,1024], index: 5, kind: output, shape index: {}]
  %s6 = sld [smem:[#allocation0]]
  $region73: #{tpu_custom_call.1} parent=0
    _
  %s8 = ssub.s32 1, %s6
  %s9 = scalar_select 0, %s8, %s6
  $region1: #{tpu_custom_call.1} parent=0
    #allocation3 [shape = 'u8[4096]{0}', space=vmem, size = 0x1000, scoped, tag = 'input window, operand 0, single buffered']
    #allocation4 [shape = 's32[2]{0}', space=sflag, size = 0x8, scoped, tag = 'scoped memory for tpu_custom_call.1']
    #allocation5 [shape = 's32[2]{0}', space=sflag, size = 0x8, scoped, tag = 'scoped memory for tpu_custom_call.1']
    #allocation6 [shape = 'u8[4096]{0}', space=vmem, size = 0x1000, scoped, tag = 'input window, operand 1, single buffered']
    #allocation7 [shape = 's32[1]{0}', space=sflag, size = 0x4, scoped, tag = 'scoped memory for tpu_custom_call.1']
    #allocation8 [shape = 'u8[65536]{0}', space=vmem, size = 0x10000, scoped, tag = 'input window, operand 3']
    #allocation9 [shape = 'u8[4096]{0}', space=vmem, size = 0x1000, scoped, tag = 'input window, operand 4']
    #allocation10 [shape = 'u8[32768]{0}', space=vmem, size = 0x8000, scoped, tag = 'output window, operand 0']
    %10 = vsyncpa [#allocation4], 0
    %11 = vsyncpa [#allocation7], 0
    %12 = vsyncpa [#allocation5], 0
    %s13 = scalar_lea.sflag [#allocation5], 1
    %14 = vsyncpa %s13, 0
    loop: start=0, step=1, limit=4
    $region2: #{tpu_custom_call.1} parent=1 // loop_pre_header
      _
    $region3: #{tpu_custom_call.1} parent=1 // loop_header
      %s16 = sphi 0, %s20
      %p17 = scmp.ge.s32.totalorder %s16, 4
      %s23 = sphi 0, %s35
      %s24 = sphi 0, %s31
      %s25 = sphi 0, %s23
      %s26 = sphi 0, %s24
      %s27 = sphi 0, %s25
      %s28 = sphi 0, %s26
      %s38 = sphi 0, %s40
      %s41 = sphi 0, %s38
      %s42 = sphi 0, %s41
      %s58 = sphi 0, %s42
      %s62 = sphi 0, %s62
      %s64 = sphi 0, %s62
      %s65 = sphi 0, %s64
      %s79 = sphi 0, %s65
      %s83 = sphi 0, %s83
      %s85 = sphi 0, %s83
      %s86 = sphi 0, %s85
      %s100 = sphi 0, %s86
      %s106 = sphi 0, %s108
      %s109 = sphi 0, %s106
      %s110 = sphi 0, %s109
      %s126 = sphi 0, %s110
      %s132 = sphi 0, %s134
      %s135 = sphi 0, %s132
      %s136 = sphi 0, %s135
      %s152 = sphi 0, %s136
      %s160 = sphi 0, %s162
      %s163 = sphi 0, %s160
      %s164 = sphi 0, %s163
      %s180 = sphi 0, %s164
    $region4: #{tpu_custom_call.1} parent=1 // loop_header_branch
      %19 = sbr.rel (%p17) target = $region8
    $region5: #{tpu_custom_call.1} parent=1 // loop_body
      %s21 = ssub.s32 %s16, 1
      %s22 = ssub.s32 %s16, 2
      %s29 = sadd.s32 1, %s24
      %p30 = scmp.ge.s32.totalorder %s29, 2
      %s31 = scalar_select %p30, 0, %s29
      %s32 = sadd.s32 1, %s23
      %s33 = scalar_select %p30, %s32, %s23
      %p34 = scmp.ge.s32.totalorder %s33, 1
      %s35 = scalar_select %p34, 0, %s33
      %s36 = ssub.s32 %s23, %s35
      %p37 = scmp.eq.s32.totalorder %s36, 0
      %s39 = sadd.s32 %s38, 1
      %s40 = scalar_select %p37, %s38, %s39
      %p43 = pneg %p37
      %p44 = scmp.eq.s32.totalorder %s16, 1
      %p45 = por %p43, %p44
      %p46 = scmp.ne.s32.totalorder %s38, %s41
      %p47 = scmp.eq.s32.totalorder %s16, 0
      %p48 = por %p46, %p47
      %p49 = scmp.ne.s32.totalorder %s38, %s41
      %p50 = scmp.eq.s32.totalorder %s21, 1
      %p51 = por %p49, %p50
      %p52 = scmp.ne.s32.totalorder %s41, %s42
      %p53 = scmp.eq.s32.totalorder %s21, 0
      %p54 = por %p52, %p53
      %p55 = scmp.ne.s32.totalorder %s41, %s42
      %p56 = scmp.eq.s32.totalorder %s22, 1
      %p57 = por %p55, %p56
      %p59 = scmp.ne.s32.totalorder %s42, %s58
      %p60 = scmp.eq.s32.totalorder %s22, 0
      %p61 = por %p59, %p60
      %s63 = sadd.s32 %s62, 1
      %p66 = scmp.eq.s32.totalorder %s16, 1
      %p67 = scmp.ne.s32.totalorder %s62, %s64
      %p68 = scmp.eq.s32.totalorder %s16, 0
      %p69 = por %p67, %p68
      %p70 = scmp.ne.s32.totalorder %s62, %s64
      %p71 = scmp.eq.s32.totalorder %s21, 1
      %p72 = por %p70, %p71
      %p73 = scmp.ne.s32.totalorder %s64, %s65
      %p74 = scmp.eq.s32.totalorder %s21, 0
      %p75 = por %p73, %p74
      %p76 = scmp.ne.s32.totalorder %s64, %s65
      %p77 = scmp.eq.s32.totalorder %s22, 1
      %p78 = por %p76, %p77
      %p80 = scmp.ne.s32.totalorder %s65, %s79
      %p81 = scmp.eq.s32.totalorder %s22, 0
      %p82 = por %p80, %p81
      %s84 = sadd.s32 %s83, 1
      %p87 = scmp.eq.s32.totalorder %s16, 1
      %p88 = scmp.ne.s32.totalorder %s83, %s85
      %p89 = scmp.eq.s32.totalorder %s16, 0
      %p90 = por %p88, %p89
      %p91 = scmp.ne.s32.totalorder %s83, %s85
      %p92 = scmp.eq.s32.totalorder %s21, 1
      %p93 = por %p91, %p92
      %p94 = scmp.ne.s32.totalorder %s85, %s86
      %p95 = scmp.eq.s32.totalorder %s21, 0
      %p96 = por %p94, %p95
      %p97 = scmp.ne.s32.totalorder %s85, %s86
      %p98 = scmp.eq.s32.totalorder %s22, 1
      %p99 = por %p97, %p98
      %p101 = scmp.ne.s32.totalorder %s86, %s100
      %p102 = scmp.eq.s32.totalorder %s22, 0
      %p103 = por %p101, %p102
      %s104 = ssub.s32 %s24, %s31
      %p105 = scmp.eq.s32.totalorder %s104, 0
      %s107 = sadd.s32 %s106, 1
      %s108 = scalar_select %p105, %s106, %s107
      %p111 = pneg %p105
      %p112 = scmp.eq.s32.totalorder %s16, 1
      %p113 = por %p111, %p112
      %p114 = scmp.ne.s32.totalorder %s106, %s109
      %p115 = scmp.eq.s32.totalorder %s16, 0
      %p116 = por %p114, %p115
      %p117 = scmp.ne.s32.totalorder %s106, %s109
      %p118 = scmp.eq.s32.totalorder %s21, 1
      %p119 = por %p117, %p118
      %p120 = scmp.ne.s32.totalorder %s109, %s110
      %p121 = scmp.eq.s32.totalorder %s21, 0
      %p122 = por %p120, %p121
      %p123 = scmp.ne.s32.totalorder %s109, %s110
      %p124 = scmp.eq.s32.totalorder %s22, 1
      %p125 = por %p123, %p124
      %p127 = scmp.ne.s32.totalorder %s110, %s126
      %p128 = scmp.eq.s32.totalorder %s22, 0
      %p129 = por %p127, %p128
      %s130 = ssub.s32 %s24, %s31
      %p131 = scmp.eq.s32.totalorder %s130, 0
      %s133 = sadd.s32 %s132, 1
      %s134 = scalar_select %p131, %s132, %s133
      %p137 = pneg %p131
      %p138 = scmp.eq.s32.totalorder %s16, 1
      %p139 = por %p137, %p138
      %p140 = scmp.ne.s32.totalorder %s132, %s135
      %p141 = scmp.eq.s32.totalorder %s16, 0
      %p142 = por %p140, %p141
      %p143 = scmp.ne.s32.totalorder %s132, %s135
      %p144 = scmp.eq.s32.totalorder %s21, 1
      %p145 = por %p143, %p144
      %p146 = scmp.ne.s32.totalorder %s135, %s136
      %p147 = scmp.eq.s32.totalorder %s21, 0
      %p148 = por %p146, %p147
      %p149 = scmp.ne.s32.totalorder %s135, %s136
      %p150 = scmp.eq.s32.totalorder %s22, 1
      %p151 = por %p149, %p150
      %p153 = scmp.ne.s32.totalorder %s136, %s152
      %p154 = scmp.eq.s32.totalorder %s22, 0
      %p155 = por %p153, %p154
      %s156 = ssub.s32 %s23, %s35
      %s157 = ssub.s32 %s24, %s31
      %s158 = sor.u32 %s156, %s157
      %p159 = scmp.eq.s32.totalorder %s158, 0
      %s161 = sadd.s32 %s160, 1
      %s162 = scalar_select %p159, %s160, %s161
      %p165 = pneg %p159
      %p166 = scmp.eq.s32.totalorder %s16, 1
      %p167 = por %p165, %p166
      %p168 = scmp.ne.s32.totalorder %s160, %s163
      %p169 = scmp.eq.s32.totalorder %s16, 0
      %p170 = por %p168, %p169
      %p171 = scmp.ne.s32.totalorder %s160, %s163
      %p172 = scmp.eq.s32.totalorder %s21, 1
      %p173 = por %p171, %p172
      %p174 = scmp.ne.s32.totalorder %s163, %s164
      %p175 = scmp.eq.s32.totalorder %s21, 0
      %p176 = por %p174, %p175
      %p177 = scmp.ne.s32.totalorder %s163, %s164
      %p178 = scmp.eq.s32.totalorder %s22, 1
      %p179 = por %p177, %p178
      %p181 = scmp.ne.s32.totalorder %s164, %s180
      %p182 = scmp.eq.s32.totalorder %s22, 0
      %p183 = por %p181, %p182
      %p184 = scmp.le.s32.totalorder 1, %s16
      %p185 = scmp.lt.s32.totalorder %s16, 3
      %p186 = pnand %p184, %p185
      %p187 = pneg %p186
      // Predicated region
      $region9: #{tpu_custom_call.1} parent=5 // pred_check
        _
      $region10: #{tpu_custom_call.1} parent=5 // pred_check_branch
        %189 = sbr.rel (%p186) target = $region12
      $region11: #{tpu_custom_call.1} parent=5 // pred_region
        %s190 = ssub.s32 %s16, 1
        // Predicated region
        $region13: #{tpu_custom_call.1} parent=11 // pred_check
          %p191 = pneg %p54
        $region14: #{tpu_custom_call.1} parent=11 // pred_check_branch
          %193 = sbr.rel (%p191) target = $region16
        $region15: #{tpu_custom_call.1} parent=11 // pred_region
          %s195 = ssub.s32 128, 128
          %196 = vsyncadd [#allocation4], %s195
          %s197 = smul.addr %s25, 128
          %s198 = scalar_lea.hbm %s0, %s197
          %s200 = sshll.u32 [#allocation3], 4
          %s201 = int_to_ptr.vmem [resolvable:$true] %s200
          %203 = dma.hbm_to_vmem [thread:$0]  %s198, 128, %s201, [#allocation4]
        $region16: #{tpu_custom_call.1} parent=11 // pred_fallthru
          _
        // Predicated region
        $region17: #{tpu_custom_call.1} parent=11 // pred_check
          %p204 = pneg %p75
        $region18: #{tpu_custom_call.1} parent=11 // pred_check_branch
          %206 = sbr.rel (%p204) target = $region20
        $region19: #{tpu_custom_call.1} parent=11 // pred_region
          %s208 = ssub.s32 128, 128
          %209 = vsyncadd [#allocation7], %s208
          %s210 = sshll.u32 [#allocation6], 4
          %s211 = int_to_ptr.vmem [resolvable:$true] %s210
          %216 = dma.hbm_to_vmem [thread:$0]  %s1, 128, %s211, [#allocation7], 64, 64, 4
        $region20: #{tpu_custom_call.1} parent=11 // pred_fallthru
          _
        // Predicated region
        $region21: #{tpu_custom_call.1} parent=11 // pred_check
          %p217 = pneg %p96
        $region22: #{tpu_custom_call.1} parent=11 // pred_check_branch
          %219 = sbr.rel (%p217) target = $region24
        $region23: #{tpu_custom_call.1} parent=11 // pred_region
          _
        $region24: #{tpu_custom_call.1} parent=11 // pred_fallthru
          _
      $region12: #{tpu_custom_call.1} parent=5 // pred_fallthru
        _
      %p220 = scmp.lt.s32.totalorder %s16, 2
      // Predicated region
      $region25: #{tpu_custom_call.1} parent=5 // pred_check
        %p221 = pneg %p220
      $region26: #{tpu_custom_call.1} parent=5 // pred_check_branch
        %223 = sbr.rel (%p221) target = $region28
      $region27: #{tpu_custom_call.1} parent=5 // pred_region
        // Predicated region
        $region29: #{tpu_custom_call.1} parent=27 // pred_check
          %p224 = pneg %p116
        $region30: #{tpu_custom_call.1} parent=27 // pred_check_branch
          %226 = sbr.rel (%p224) target = $region32
        $region31: #{tpu_custom_call.1} parent=27 // pred_region
          %s227 = sand.u32 %s16, 1
          %s228 = scalar_lea.sflag [#allocation4], %s227
          %s229 = sand.u32 %s106, 1
          %s230 = smul.addr %s229, 64
          %s231 = scalar_lea.vmem [#allocation8], %s230
          %s232 = smul.u32 4, %s24
          %s234 = ssub.s32 1024, 1024
          %235 = vsyncadd %s228, %s234
          %s236 = smul.addr %s232, 64
          %s237 = scalar_lea.hbm %s3, %s236
          %s238 = sshll.u32 %s231, 4
          %s239 = int_to_ptr.vmem [resolvable:$true] %s238
          %244 = dma.hbm_to_vmem [thread:$0]  %s237, 1024, %s239, %s228, 512, 256, 16
        $region32: #{tpu_custom_call.1} parent=27 // pred_fallthru
          _
        // Predicated region
        $region33: #{tpu_custom_call.1} parent=27 // pred_check
          %p245 = pneg %p142
        $region34: #{tpu_custom_call.1} parent=27 // pred_check_branch
          %247 = sbr.rel (%p245) target = $region36
        $region35: #{tpu_custom_call.1} parent=27 // pred_region
          %s248 = sand.u32 %s16, 1
          %s249 = scalar_lea.sflag [#allocation4], %s248
          %s250 = sand.u32 %s132, 1
          %s251 = smul.addr %s250, 4
          %s252 = scalar_lea.vmem [#allocation9], %s251
          %s253 = smul.u32 4, %s24
          %s255 = ssub.s32 64, 64
          %256 = vsyncadd %s249, %s255
          %s257 = smul.addr %s253, 16
          %s258 = scalar_lea.hbm %s4, %s257
          %s260 = sshll.u32 %s252, 4
          %s261 = int_to_ptr.vmem [resolvable:$true] %s260
          %263 = dma.hbm_to_vmem [thread:$0]  %s258, 64, %s261, %s249
        $region36: #{tpu_custom_call.1} parent=27 // pred_fallthru
          _
      $region28: #{tpu_custom_call.1} parent=5 // pred_fallthru
        _
      %p264 = scmp.le.s32.totalorder 1, %s16
      %p265 = scmp.lt.s32.totalorder %s16, 3
      %p266 = pnand %p264, %p265
      %p267 = pneg %p266
      // Predicated region
      $region37: #{tpu_custom_call.1} parent=5 // pred_check
        _
      $region38: #{tpu_custom_call.1} parent=5 // pred_check_branch
        %269 = sbr.rel (%p266) target = $region40
      $region39: #{tpu_custom_call.1} parent=5 // pred_region
        %s270 = ssub.s32 %s16, 1
        // Predicated region
        $region41: #{tpu_custom_call.1} parent=39 // pred_check
          %p271 = pneg %p54
        $region42: #{tpu_custom_call.1} parent=39 // pred_check_branch
          %273 = sbr.rel (%p271) target = $region44
        $region43: #{tpu_custom_call.1} parent=39 // pred_region
          %274 = dma.done [#allocation4], 128
        $region44: #{tpu_custom_call.1} parent=39 // pred_fallthru
          _
        // Predicated region
        $region45: #{tpu_custom_call.1} parent=39 // pred_check
          %p275 = pneg %p75
        $region46: #{tpu_custom_call.1} parent=39 // pred_check_branch
          %277 = sbr.rel (%p275) target = $region48
        $region47: #{tpu_custom_call.1} parent=39 // pred_region
          %278 = dma.done [#allocation7], 128
        $region48: #{tpu_custom_call.1} parent=39 // pred_fallthru
          _
        %s279 = sand.u32 %s21, 1
        %s280 = scalar_lea.sflag [#allocation4], %s279
        %s281 = sand.u32 %s109, 1
        %s282 = smul.addr %s281, 64
        %s283 = scalar_lea.vmem [#allocation8], %s282
        // Predicated region
        $region49: #{tpu_custom_call.1} parent=39 // pred_check
          %p284 = pneg %p122
        $region50: #{tpu_custom_call.1} parent=39 // pred_check_branch
          %286 = sbr.rel (%p284) target = $region52
        $region51: #{tpu_custom_call.1} parent=39 // pred_region
          %287 = dma.done %s280, 1024
        $region52: #{tpu_custom_call.1} parent=39 // pred_fallthru
          _
        %s288 = sand.u32 %s21, 1
        %s289 = scalar_lea.sflag [#allocation4], %s288
        %s290 = sand.u32 %s135, 1
        %s291 = smul.addr %s290, 4
        %s292 = scalar_lea.vmem [#allocation9], %s291
        // Predicated region
        $region53: #{tpu_custom_call.1} parent=39 // pred_check
          %p293 = pneg %p148
        $region54: #{tpu_custom_call.1} parent=39 // pred_check_branch
          %295 = sbr.rel (%p293) target = $region56
        $region55: #{tpu_custom_call.1} parent=39 // pred_region
          %296 = dma.done %s289, 64
        $region56: #{tpu_custom_call.1} parent=39 // pred_fallthru
          _
        %p297 = pneg %p54
        %p298 = pneg %p51
        %p299 = pneg %p75
        %p300 = pneg %p72
        %p301 = pneg %p96
        %p302 = pneg %p93
        %s303 = sand.u32 %s21, 1
        %s304 = scalar_lea.sflag [#allocation4], %s303
        %s305 = sand.u32 %s109, 1
        %s306 = smul.addr %s305, 64
        %s307 = scalar_lea.vmem [#allocation8], %s306
        %p308 = pneg %p122
        %p309 = pneg %p119
        %s310 = sand.u32 %s21, 1
        %s311 = scalar_lea.sflag [#allocation4], %s310
        %s312 = sand.u32 %s135, 1
        %s313 = smul.addr %s312, 4
        %s314 = scalar_lea.vmem [#allocation9], %s313
        %p315 = pneg %p148
        %p316 = pneg %p145
        %p317 = pneg %p176
        %p318 = pneg %p173
        %s319 = sand.u32 %s163, 1
        %s320 = scalar_lea.sflag [#allocation5], %s319
        %s321 = sand.u32 %s163, 1
        %s322 = smul.addr %s321, 32
        %s323 = scalar_lea.vmem [#allocation10], %s322
        %s324 = smul.u32 4, %s26
        %s325 = smul.u32 4, %s26
        %s326 = smul.u32 4, %s26
        %p328 = scmp.eq.s32.totalorder %s26, 0
        // Predicated region
        $region57: #{tpu_custom_call.1} parent=39 // pred_check
          %p329 = pneg %p328
        $region58: #{tpu_custom_call.1} parent=39 // pred_check_branch
          %331 = sbr.rel (%p329) target = $region60
        $region59: #{tpu_custom_call.1} parent=39 // pred_region
          %v332 = vld [vmem:[#allocation3] sm:$0xff]
          %v333 = vpack.c.bf16 %v332, %v332
          %v334 = vld [vmem:[#allocation6] sm:$0xf]
          %v335 = vld [vmem:[#allocation6 + $0x4] sm:$0xf]
          %v336 = vld [vmem:[%s2] sm:$0x1]
          %v338 = vlaneseq
          %v339 = vshrl.u32 %v338, 7
          %v340 = vsub.s32 0, %v339
          %v341 = vrot.slane %v336, %v340
          %v345 = vunpack.c.l.b16 %v334
          %v346 = vunpack.c.l.b16 %v335
          %v347 = vpack.c.b16 %v346, %v345
          %vm349 = vcmask 130048
          %v351 = vsel %vm349, %v333, 0
          %353 = vmatprep.subr.bf16.mxu0 0
          %354 = vmatpush1.bf16.msra.mxu0 0
          %355 = vmatprep.subr.bf16.mxu0 0
          %356 = vmatpush1.bf16.msra.mxu0 0
          %357 = vmatprep.subr.bf16.mxu0 0
          %358 = vmatpush1.bf16.msra.mxu0 0
          %359 = vmatprep.subr.bf16.mxu0 0
          %360 = vmatpush1.bf16.msra.mxu0 0
          %361 = vmatprep.subr.bf16.mxu0 0
          %362 = vmatpush1.bf16.msra.mxu0 0
          %363 = vmatprep.subr.bf16.mxu0 0
          %364 = vmatpush1.bf16.msra.mxu0 0
          %365 = vmatprep.subr.bf16.mxu0 0
          %366 = vmatpush1.bf16.msra.mxu0 0
          %367 = vmatprep.subr.bf16.mxu0 0
          %368 = vmatpush1.bf16.msra.mxu0 %v347
          %369 = vmatprep.subr.bf16.mxu0 0
          %370 = vmatpush2.bf16.msra.mxu0 0
          %371 = vmatprep.subr.bf16.mxu0 0
          %372 = vmatpush2.bf16.msra.mxu0 0
          %373 = vmatprep.subr.bf16.mxu0 0
          %374 = vmatpush2.bf16.msra.mxu0 0
          %375 = vmatprep.subr.bf16.mxu0 0
          %376 = vmatpush2.bf16.msra.mxu0 0
          %377 = vmatprep.subr.bf16.mxu0 0
          %378 = vmatpush2.bf16.msra.mxu0 0
          %379 = vmatprep.subr.bf16.mxu0 0
          %380 = vmatpush2.bf16.msra.mxu0 0
          %381 = vmatprep.subr.bf16.mxu0 0
          %382 = vmatpush2.bf16.msra.mxu0 0
          %383 = vmatprep.subr.bf16.mxu0 0
          %384 = vmatpush2.bf16.msra.mxu0 0
          %385 = vmatprep.mubr.bf16.mxu0 0
          %386 = vmatmul.mubr.bf16.gmra.mxu0 %v351
          %v387 = vpop.f32.mrf.mxu0
          %v388 = vadd.f32 %v341, %v387
          %v389 = vpop.f32.mrf.mxu0
          %v390 = vpop.f32.mrf.mxu0
          %v391 = vpop.f32.mrf.mxu0
          %392 = vdwg.mxu0
          %v393 = vmax.f32 %v388, 0.0
          %v394 = vpack.c.bf16 %v393, %v393
          %vm395 = vcmask 257024
          %396 = vst.msk [vmem:[#allocation2] sm:$0xf] %vm395, %v394
        $region60: #{tpu_custom_call.1} parent=39 // pred_fallthru
          _
        %v397 = vld [vmem:[#allocation2] sm:$0xf]
        %v398 = vld [vmem:[%s283] sm:$0xff]
        %v399 = vld [vmem:[%s283 + $0x8] sm:$0xff]
        %v400 = vld [vmem:[%s283 + $0x10] sm:$0xff]
        %v401 = vld [vmem:[%s283 + $0x18] sm:$0xff]
        %v402 = vld [vmem:[%s283 + $0x20] sm:$0xff]
        %v403 = vld [vmem:[%s283 + $0x28] sm:$0xff]
        %v404 = vld [vmem:[%s283 + $0x30] sm:$0xff]
        %v405 = vld [vmem:[%s283 + $0x38] sm:$0xff]
        %v406 = vld [vmem:[%s292] sm:$0xf]
        %v408 = vlaneseq
        %v409 = vshrl.u32 %v408, 7
        %v410 = vsub.s32 0, %v409
        %v411 = vrot.slane %v406, %v410
        %v412 = vlaneseq
        %v413 = vshrl.u32 %v412, 7
        %v414 = vsub.s32 1, %v413
        %v415 = vrot.slane %v406, %v414
        %v416 = vlaneseq
        %v417 = vshrl.u32 %v416, 7
        %v418 = vsub.s32 2, %v417
        %v419 = vrot.slane %v406, %v418
        %v420 = vlaneseq
        %v421 = vshrl.u32 %v420, 7
        %v422 = vsub.s32 3, %v421
        %v423 = vrot.slane %v406, %v422
        %v436 = vunpack.c.l.b16 %v398
        %v437 = vunpack.c.h.b16 %v398
        %v438 = vunpack.c.l.b16 %v399
        %v439 = vunpack.c.h.b16 %v399
        %v440 = vunpack.c.l.b16 %v400
        %v441 = vunpack.c.h.b16 %v400
        %v442 = vunpack.c.l.b16 %v401
        %v443 = vunpack.c.h.b16 %v401
        %v444 = vunpack.c.l.b16 %v402
        %v445 = vunpack.c.h.b16 %v402
        %v446 = vunpack.c.l.b16 %v403
        %v447 = vunpack.c.h.b16 %v403
        %v448 = vunpack.c.l.b16 %v404
        %v449 = vunpack.c.h.b16 %v404
        %v450 = vunpack.c.l.b16 %v405
        %v451 = vunpack.c.h.b16 %v405
        %v452 = vpack.c.b16 %v440, %v436
        %v453 = vpack.c.b16 %v441, %v437
        %v454 = vpack.c.b16 %v442, %v438
        %v455 = vpack.c.b16 %v443, %v439
        %v456 = vpack.c.b16 %v448, %v444
        %v457 = vpack.c.b16 %v449, %v445
        %v458 = vpack.c.b16 %v450, %v446
        %v459 = vpack.c.b16 %v451, %v447
        %vm468 = vcmask 261120
        %v470 = vsel %vm468, %v397, 0
        %472 = vmatprep.subr.bf16.mxu0 0
        %473 = vmatpush1.bf16.msra.mxu0 0
        %474 = vmatprep.subr.bf16.mxu0 0
        %475 = vmatpush1.bf16.msra.mxu0 0
        %476 = vmatprep.subr.bf16.mxu0 0
        %477 = vmatpush1.bf16.msra.mxu0 0
        %478 = vmatprep.subr.bf16.mxu0 0
        %479 = vmatpush1.bf16.msra.mxu0 0
        %480 = vmatprep.subr.bf16.mxu0 0
        %481 = vmatpush1.bf16.msra.mxu0 0
        %482 = vmatprep.subr.bf16.mxu0 0
        %483 = vmatpush1.bf16.msra.mxu0 0
        %484 = vmatprep.subr.bf16.mxu0 %v457
        %485 = vmatpush1.bf16.msra.mxu0 %v456
        %486 = vmatprep.subr.bf16.mxu0 %v453
        %487 = vmatpush1.bf16.msra.mxu0 %v452
        %488 = vmatprep.subr.bf16.mxu0 0
        %489 = vmatpush2.bf16.msra.mxu0 0
        %490 = vmatprep.subr.bf16.mxu0 0
        %491 = vmatpush2.bf16.msra.mxu0 0
        %492 = vmatprep.subr.bf16.mxu0 0
        %493 = vmatpush2.bf16.msra.mxu0 0
        %494 = vmatprep.subr.bf16.mxu0 0
        %495 = vmatpush2.bf16.msra.mxu0 0
        %496 = vmatprep.subr.bf16.mxu0 0
        %497 = vmatpush2.bf16.msra.mxu0 0
        %498 = vmatprep.subr.bf16.mxu0 0
        %499 = vmatpush2.bf16.msra.mxu0 0
        %500 = vmatprep.subr.bf16.mxu0 0
        %501 = vmatpush2.bf16.msra.mxu0 0
        %502 = vmatprep.subr.bf16.mxu0 0
        %503 = vmatpush2.bf16.msra.mxu0 0
        %504 = vmatprep.mubr.bf16.mxu0 0
        %505 = vmatmul.mubr.bf16.gmra.mxu0 %v470
        %v506 = vpop.f32.mrf.mxu0
        %v507 = vadd.f32 %v411, %v506
        %v508 = vpop.f32.mrf.mxu0
        %v509 = vadd.f32 %v415, %v508
        %v510 = vpop.f32.mrf.mxu0
        %v511 = vpop.f32.mrf.mxu0
        %512 = vdwg.mxu0
        %513 = vmatprep.subr.bf16.mxu0 0
        %514 = vmatpush1.bf16.msra.mxu0 0
        %515 = vmatprep.subr.bf16.mxu0 0
        %516 = vmatpush1.bf16.msra.mxu0 0
        %517 = vmatprep.subr.bf16.mxu0 0
        %518 = vmatpush1.bf16.msra.mxu0 0
        %519 = vmatprep.subr.bf16.mxu0 0
        %520 = vmatpush1.bf16.msra.mxu0 0
        %521 = vmatprep.subr.bf16.mxu0 0
        %522 = vmatpush1.bf16.msra.mxu0 0
        %523 = vmatprep.subr.bf16.mxu0 0
        %524 = vmatpush1.bf16.msra.mxu0 0
        %525 = vmatprep.subr.bf16.mxu0 %v459
        %526 = vmatpush1.bf16.msra.mxu0 %v458
        %527 = vmatprep.subr.bf16.mxu0 %v455
        %528 = vmatpush1.bf16.msra.mxu0 %v454
        %529 = vmatprep.subr.bf16.mxu0 0
        %530 = vmatpush2.bf16.msra.mxu0 0
        %531 = vmatprep.subr.bf16.mxu0 0
        %532 = vmatpush2.bf16.msra.mxu0 0
        %533 = vmatprep.subr.bf16.mxu0 0
        %534 = vmatpush2.bf16.msra.mxu0 0
        %535 = vmatprep.subr.bf16.mxu0 0
        %536 = vmatpush2.bf16.msra.mxu0 0
        %537 = vmatprep.subr.bf16.mxu0 0
        %538 = vmatpush2.bf16.msra.mxu0 0
        %539 = vmatprep.subr.bf16.mxu0 0
        %540 = vmatpush2.bf16.msra.mxu0 0
        %541 = vmatprep.subr.bf16.mxu0 0
        %542 = vmatpush2.bf16.msra.mxu0 0
        %543 = vmatprep.subr.bf16.mxu0 0
        %544 = vmatpush2.bf16.msra.mxu0 0
        %545 = vmatprep.mubr.bf16.mxu0 0
        %546 = vmatmul.mubr.bf16.gmra.mxu0 %v470
        %v547 = vpop.f32.mrf.mxu0
        %v548 = vadd.f32 %v419, %v547
        %v549 = vpop.f32.mrf.mxu0
        %v550 = vadd.f32 %v423, %v549
        %v551 = vpop.f32.mrf.mxu0
        %v552 = vpop.f32.mrf.mxu0
        %553 = vdwg.mxu0
        %554 = vst [vmem:[%s323] sm:$0xff] %v507
        %555 = vst [vmem:[%s323 + $0x8] sm:$0xff] %v509
        %556 = vst [vmem:[%s323 + $0x10] sm:$0xff] %v548
        %557 = vst [vmem:[%s323 + $0x18] sm:$0xff] %v550
        %s558 = sand.u32 %s163, 1
        %s559 = scalar_lea.sflag [#allocation5], %s558
        %s560 = sand.u32 %s163, 1
        %s561 = smul.addr %s560, 32
        %s562 = scalar_lea.vmem [#allocation10], %s561
        // Predicated region
        $region61: #{tpu_custom_call.1} parent=39 // pred_check
          %p563 = pneg %p173
        $region62: #{tpu_custom_call.1} parent=39 // pred_check_branch
          %565 = sbr.rel (%p563) target = $region64
        $region63: #{tpu_custom_call.1} parent=39 // pred_region
          %s566 = smul.u32 4, %s26
          %s568 = ssub.s32 512, 512
          %569 = vsyncadd %s559, %s568
          %s570 = smul.addr %s25, 8
          %s571 = sadd.s32 %s566, %s570
          %s572 = smul.addr %s571, 128
          %s573 = scalar_lea.hbm %s5, %s572
          %s575 = sshll.u32 %s562, 4
          %s576 = int_to_ptr.vmem [resolvable:$true] %s575
          %578 = dma.vmem_to_hbm [thread:$0]  %s576, 512, %s573, %s559
        $region64: #{tpu_custom_call.1} parent=39 // pred_fallthru
          _
      $region40: #{tpu_custom_call.1} parent=5 // pred_fallthru
        _
      %p579 = scmp.le.s32.totalorder 2, %s16
      // Predicated region
      $region65: #{tpu_custom_call.1} parent=5 // pred_check
        %p580 = pneg %p579
      $region66: #{tpu_custom_call.1} parent=5 // pred_check_branch
        %582 = sbr.rel (%p580) target = $region68
      $region67: #{tpu_custom_call.1} parent=5 // pred_region
        %s583 = ssub.s32 %s16, 2
        // Predicated region
        $region69: #{tpu_custom_call.1} parent=67 // pred_check
          %p584 = pneg %p179
        $region70: #{tpu_custom_call.1} parent=67 // pred_check_branch
          %586 = sbr.rel (%p584) target = $region72
        $region71: #{tpu_custom_call.1} parent=67 // pred_region
          %s587 = sand.u32 %s164, 1
          %s588 = scalar_lea.sflag [#allocation5], %s587
          %s589 = sand.u32 %s164, 1
          %s590 = smul.addr %s589, 32
          %s591 = scalar_lea.vmem [#allocation10], %s590
          %592 = dma.done %s588, 512
        $region72: #{tpu_custom_call.1} parent=67 // pred_fallthru
          _
      $region68: #{tpu_custom_call.1} parent=5 // pred_fallthru
        _
    $region6: #{tpu_custom_call.1} parent=1 // loop_footer
      %s20 = sadd.s32 1, %s16
    $region7: #{tpu_custom_call.1} parent=1 // loop_footer_branch
      %15 = sbr.rel target = $region3
    $region8: #{tpu_custom_call.1} parent=1 // loop_exit
      _
    %593 = vsyncpa [#allocation4], 1
    %s594 = scalar_lea.sflag [#allocation4], 1
    %595 = vsyncpa %s594, 1
    %596 = vsyncpa [#allocation7], 1
    %597 = vsyncpa [#allocation5], 1
    %s598 = scalar_lea.sflag [#allocation5], 1
    %599 = vsyncpa %s598, 1

</llo_original>
